<compile_context>
chip_gen: v6e
topology: v6e:2x2x1
jax: 0.10.0
libtpu: 0.0.40
codegen_flags: <defaults>
</compile_context>

<pallas_src>
import functools

import jax
import jax.numpy as jnp
from jax.experimental import pallas as pl
from jax.experimental.pallas import tpu as pltpu

_LANE = 128


def _round_up(x: int, m: int) -> int:
    return ((x + m - 1) // m) * m


def _choose_tile_m(m: int, h: int, itemsize: int) -> int:
    """Row-tile size: big enough to fill the MXU, small enough for VMEM.

    Caps each x pipeline buffer at ~4 MiB so 2x buffering + weight + output
    stays under the 16 MiB v5e scoped-VMEM default (and far under v7x 64 MiB).
    """
    cap = (4 * 1024 * 1024) // max(1, h * itemsize)
    cap = max(256, (cap // 256) * 256)
    tm = min(512, cap)
    if m < tm:
        tm = _round_up(max(m, 1), 8)
    return tm


def _token_cls_kernel(x_ref, w_ref, b_ref, o_ref):
    # x_ref: [TM, H]      (one row tile of flattened hidden states)
    # w_ref: [H, N_pad]   (classifier weight, pre-transposed, VMEM-resident)
    # b_ref: [1, N_pad]   (classifier bias, VMEM-resident)
    # o_ref: [TM, N_pad]  (float32 logits tile)
    logits = jnp.dot(x_ref[...], w_ref[...], preferred_element_type=jnp.float32)
    o_ref[...] = (logits + b_ref[...]).astype(o_ref.dtype)


@functools.partial(jax.jit, static_argnames=("compute_dtype",))
def token_classification_head(hidden_states, weight, bias, compute_dtype=None):
    """hidden_states: [B, S, H], weight: [N, H], bias: [N] -> f32 logits [B, S, N].

    compute_dtype: optional streaming dtype for x / weight (e.g. jnp.bfloat16)
    to halve HBM traffic; MXU accumulation stays float32 either way.
    """
    B, S, H = hidden_states.shape
    N = weight.shape[0]
    M = B * S

    stream_dtype = jnp.dtype(compute_dtype) if compute_dtype is not None \
        else jnp.dtype(hidden_states.dtype)

    TM = _choose_tile_m(M, H, stream_dtype.itemsize)
    M_pad = _round_up(M, TM)
    N_pad = _round_up(N, _LANE)

    # Flatten + pad rows; pad label (lane) dim with zero weight columns / bias.
    x2d = hidden_states.reshape(M, H).astype(stream_dtype)
    if M_pad != M:
        x2d = jnp.pad(x2d, ((0, M_pad - M), (0, 0)))
    w_t = jnp.zeros((H, N_pad), stream_dtype).at[:, :N].set(
        weight.T.astype(stream_dtype))
    b2d = jnp.zeros((1, N_pad), jnp.float32).at[0, :N].set(
        bias.astype(jnp.float32))

    grid = (M_pad // TM,)
    out2d = pl.pallas_call(
        _token_cls_kernel,
        out_shape=jax.ShapeDtypeStruct((M_pad, N_pad), jnp.float32),
        grid=grid,
        in_specs=[
            pl.BlockSpec((TM, H), lambda i: (i, 0)),       # x: streamed per tile
            pl.BlockSpec((H, N_pad), lambda i: (0, 0)),    # weight: VMEM-resident
            pl.BlockSpec((1, N_pad), lambda i: (0, 0)),    # bias: VMEM-resident
        ],
        out_specs=pl.BlockSpec((TM, N_pad), lambda i: (i, 0)),
        compiler_params=pltpu.CompilerParams(
            # Row tiles are independent -> shard across both v7x TensorCores.
            dimension_semantics=("parallel",),
        ),
    )(x2d, w_t, b2d)

    return out2d[:M, :N].reshape(B, S, N)


if __name__ == "__main__":
    batch, seq, hidden_size, num_labels = 2, 8, 32, 5

    key = jax.random.PRNGKey(0)
    k_x, k_w = jax.random.split(key)

    # Deterministic parameter init mirroring nn.init.normal_(std=0.02) / zeros_.
    hidden_states = jax.random.normal(k_x, (batch, seq, hidden_size), jnp.float32)
    weight = 0.02 * jax.random.normal(k_w, (num_labels, hidden_size), jnp.float32)
    bias = jnp.zeros((num_labels,), jnp.float32)

    # Reference (eval-mode dropout == identity).
    ref = hidden_states @ weight.T + bias

    # Full-precision path.
    logits = token_classification_head(hidden_states, weight, bias)
    jax.block_until_ready(logits)
    assert logits.shape == (batch, seq, num_labels)
    assert logits.dtype == jnp.float32
    assert jnp.allclose(logits, ref, atol=1e-5, rtol=1e-5)

    # bf16-streamed path (halves HBM bytes for x/W; f32 accumulate in MXU).
    logits_bf16 = token_classification_head(
        hidden_states, weight, bias, compute_dtype=jnp.bfloat16)
    jax.block_until_ready(logits_bf16)
    assert logits_bf16.dtype == jnp.float32
    assert jnp.allclose(logits_bf16, ref, atol=2e-2, rtol=2e-2)

    print("KERNEL_OK")
</pallas_src>

<mosaic_0001>
module attributes {stable_mosaic.version = 11 : i64} {
  func.func @_token_cls_kernel(%arg0: i32, %arg1: memref<16x32xf32, #tpu.memory_space<vmem>>, %arg2: memref<32x128xf32, #tpu.memory_space<vmem>>, %arg3: memref<1x128xf32, #tpu.memory_space<vmem>>, %arg4: memref<16x128xf32, #tpu.memory_space<vmem>>) attributes {dimension_semantics = [#tpu.dimension_semantics<parallel>], iteration_bounds = array<i64: 1>, scalar_prefetch = 0 : i64, scratch_operands = 0 : i64, tpu.core_type = #tpu.core_type<tc>, window_params = [{transform_indices = @transform_0, window_bounds = array<i64: 16, 32>}, {pipeline_mode = #tpu.pipeline_mode<synchronous>, transform_indices = @transform_1, window_bounds = array<i64: 32, 128>}, {pipeline_mode = #tpu.pipeline_mode<synchronous>, transform_indices = @transform_2, window_bounds = array<i64: 1, 128>}, {transform_indices = @transform_3, window_bounds = array<i64: 16, 128>}]} {
    %c0 = arith.constant 0 : index
    %c0_0 = arith.constant 0 : index
    %0 = vector.load %arg1[%c0, %c0_0] : memref<16x32xf32, #tpu.memory_space<vmem>>, vector<16x32xf32>
    %c0_1 = arith.constant 0 : index
    %c0_2 = arith.constant 0 : index
    %1 = vector.load %arg2[%c0_1, %c0_2] : memref<32x128xf32, #tpu.memory_space<vmem>>, vector<32x128xf32>
    %cst = arith.constant dense<0.000000e+00> : vector<16x128xf32>
    %2 = tpu.matmul %0, %1, %cst {dimension_numbers = #tpu.dot_dimension_numbers<[1], [0], [0], [1], [0, 0, 1, 1], [], []>} : vector<16x32xf32>, vector<32x128xf32>, vector<16x128xf32> -> vector<16x128xf32>
    %c0_3 = arith.constant 0 : index
    %c0_4 = arith.constant 0 : index
    %3 = vector.load %arg3[%c0_3, %c0_4] : memref<1x128xf32, #tpu.memory_space<vmem>>, vector<1x128xf32>
    %4 = vector.broadcast %3 : vector<1x128xf32> to vector<16x128xf32>
    %5 = arith.addf %2, %4 : vector<16x128xf32>
    %c0_5 = arith.constant 0 : index
    %c0_6 = arith.constant 0 : index
    %6 = vector.load %arg4[%c0_5, %c0_6] : memref<16x128xf32, #tpu.memory_space<vmem>>, vector<16x128xf32>
    tpu.vector_store %arg4[%c0_5, %c0_6], %5 {strides = array<i32>} : memref<16x128xf32, #tpu.memory_space<vmem>>, vector<16x128xf32>,
    return
  }
  func.func @transform_0(%arg0: i32) -> (i32, i32) {
    %c0_i32 = arith.constant 0 : i32
    %c0_i32_0 = arith.constant 0 : i32
    return %arg0, %c0_i32 : i32, i32
  }
  func.func @transform_1(%arg0: i32) -> (i32, i32) {
    %c0_i32 = arith.constant 0 : i32
    %c0_i32_0 = arith.constant 0 : i32
    %c0_i32_1 = arith.constant 0 : i32
    return %c0_i32, %c0_i32_0 : i32, i32
  }
  func.func @transform_2(%arg0: i32) -> (i32, i32) {
    %c0_i32 = arith.constant 0 : i32
    %c0_i32_0 = arith.constant 0 : i32
    %c0_i32_1 = arith.constant 0 : i32
    return %c0_i32, %c0_i32_0 : i32, i32
  }
  func.func @transform_3(%arg0: i32) -> (i32, i32) {
    %c0_i32 = arith.constant 0 : i32
    %c0_i32_0 = arith.constant 0 : i32
    return %arg0, %c0_i32 : i32, i32
  }
}

</mosaic_0001>

<llo_original>
// kernel: token_classification_head.1
$region0: #{token_classification_head.1}
  #allocation0 [shape = 'u32[]', space=smem, size = 0x4, offset = 0x4, fixed_abs, tag = 'smem constant byte address 0x4 - core index']
  #allocation1 [shape = 'u32[144,128]{1,0:T(1,128)}', space=vmem, size = 0x12000, scoped, tag = 'internal scratch']
  %s0 = inlined_call_operand.vmem [shape: f32[16,32], index: 0, kind: input, shape index: {}]
  %s1 = inlined_call_operand.vmem [shape: f32[32,128], index: 1, kind: input, shape index: {}]
  %s2 = inlined_call_operand.vmem [shape: f32[1,128], index: 2, kind: input, shape index: {}]
  %s3 = inlined_call_operand.vmem [shape: f32[16,128], index: 3, kind: output, shape index: {}]
  %s4 = sld [smem:[#allocation0]]
  $region22: #{token_classification_head.1} parent=0
    _
  %s6 = ssub.s32 1, %s4
  %s7 = scalar_select 0, %s6, %s4
  // Predicated region
  $region2: #{token_classification_head.1} parent=0 // pred_check
    _
  $region3: #{token_classification_head.1} parent=0 // pred_check_branch
    %9 = sbr.rel (0) target = $region5
  $region4: #{token_classification_head.1} parent=0 // pred_region
    _
  $region5: #{token_classification_head.1} parent=0 // pred_fallthru
    _
  // Predicated region
  $region6: #{token_classification_head.1} parent=0 // pred_check
    _
  $region7: #{token_classification_head.1} parent=0 // pred_check_branch
    %11 = sbr.rel (0) target = $region9
  $region8: #{token_classification_head.1} parent=0 // pred_region
    _
  $region9: #{token_classification_head.1} parent=0 // pred_fallthru
    _
  // Predicated region
  $region10: #{token_classification_head.1} parent=0 // pred_check
    _
  $region11: #{token_classification_head.1} parent=0 // pred_check_branch
    %13 = sbr.rel (0) target = $region13
  $region12: #{token_classification_head.1} parent=0 // pred_region
    _
  $region13: #{token_classification_head.1} parent=0 // pred_fallthru
    _
  %v14 = vld [vmem:[%s0] sm:$0xff]
  %v15 = vld [vmem:[%s0 + $0x8] sm:$0xff]
  %v16 = vld [vmem:[%s1] sm:$0xff]
  %v17 = vld [vmem:[%s1 + $0x8] sm:$0xff]
  %v18 = vld [vmem:[%s1 + $0x10] sm:$0xff]
  %v19 = vld [vmem:[%s1 + $0x18] sm:$0xff]
  %v20 = vld [vmem:[%s2] sm:$0x1]
  %v22 = vlaneseq
  %v23 = vshrl.u32 %v22, 7
  %v24 = vsub.s32 0, %v23
  %v25 = vrot.slane %v20, %v24
  %vm27 = vcmask 261120
  %v29 = vsel %vm27, %v14, 0
  %v32 = vsel %vm27, %v15, 0
  %34 = vmatprep.subr.mxu0 0.0
  %35 = vmatpush1.msra.mxu0 0.0
  %36 = vmatprep.subr.mxu0 0.0
  %37 = vmatpush1.msra.mxu0 0.0
  %38 = vmatprep.subr.mxu0 0.0
  %39 = vmatpush1.msra.mxu0 0.0
  %40 = vmatprep.subr.mxu0 0.0
  %41 = vmatpush1.msra.mxu0 0.0
  %42 = vmatprep.subr.mxu0 0.0
  %43 = vmatpush1.msra.mxu0 0.0
  %44 = vmatprep.subr.mxu0 0.0
  %45 = vmatpush1.msra.mxu0 0.0
  %46 = vmatprep.subr.mxu0 0.0
  %47 = vmatpush1.msra.mxu0 0.0
  %48 = vmatprep.subr.mxu0 0.0
  %49 = vmatpush1.msra.mxu0 0.0
  %50 = vmatprep.subr.mxu0 0.0
  %51 = vmatpush1.msra.mxu0 0.0
  %52 = vmatprep.subr.mxu0 0.0
  %53 = vmatpush1.msra.mxu0 0.0
  %54 = vmatprep.subr.mxu0 0.0
  %55 = vmatpush1.msra.mxu0 0.0
  %56 = vmatprep.subr.mxu0 0.0
  %57 = vmatpush1.msra.mxu0 0.0
  %58 = vmatprep.subr.mxu0 0.0
  %59 = vmatpush1.msra.mxu0 %v19
  %60 = vmatprep.subr.mxu0 0.0
  %61 = vmatpush1.msra.mxu0 %v18
  %62 = vmatprep.subr.mxu0 0.0
  %63 = vmatpush1.msra.mxu0 %v17
  %64 = vmatprep.subr.mxu0 0.0
  %65 = vmatpush1.msra.mxu0 %v16
  %66 = vmatprep.subr.mxu0 0.0
  %67 = vmatpush2.msra.mxu0 0.0
  %68 = vmatprep.subr.mxu0 0.0
  %69 = vmatpush2.msra.mxu0 0.0
  %70 = vmatprep.subr.mxu0 0.0
  %71 = vmatpush2.msra.mxu0 0.0
  %72 = vmatprep.subr.mxu0 0.0
  %73 = vmatpush2.msra.mxu0 0.0
  %74 = vmatprep.subr.mxu0 0.0
  %75 = vmatpush2.msra.mxu0 0.0
  %76 = vmatprep.subr.mxu0 0.0
  %77 = vmatpush2.msra.mxu0 0.0
  %78 = vmatprep.subr.mxu0 0.0
  %79 = vmatpush2.msra.mxu0 0.0
  %80 = vmatprep.subr.mxu0 0.0
  %81 = vmatpush2.msra.mxu0 0.0
  %82 = vmatprep.subr.mxu0 0.0
  %83 = vmatpush2.msra.mxu0 0.0
  %84 = vmatprep.subr.mxu0 0.0
  %85 = vmatpush2.msra.mxu0 0.0
  %86 = vmatprep.subr.mxu0 0.0
  %87 = vmatpush2.msra.mxu0 0.0
  %88 = vmatprep.subr.mxu0 0.0
  %89 = vmatpush2.msra.mxu0 0.0
  %90 = vmatprep.subr.mxu0 0.0
  %91 = vmatpush2.msra.mxu0 0.0
  %92 = vmatprep.subr.mxu0 0.0
  %93 = vmatpush2.msra.mxu0 0.0
  %94 = vmatprep.subr.mxu0 0.0
  %95 = vmatpush2.msra.mxu0 0.0
  %96 = vmatprep.subr.mxu0 0.0
  %97 = vmatpush2.msra.mxu0 0.0
  %98 = vmatprep.mubr.f32.mxu0 0.0
  %99 = vmatmul.mubr.f32.gmra.mxu0 %v29
  %v100 = vpop.f32.mrf.mxu0
  %v101 = vadd.f32 %v25, %v100
  %v102 = vpop.f32.mrf.mxu0
  %103 = vmatprep.mubr.f32.mxu0 0.0
  %104 = vmatmul.mubr.f32.gmra.mxu0 %v32
  %v105 = vpop.f32.mrf.mxu0
  %v106 = vadd.f32 %v25, %v105
  %v107 = vpop.f32.mrf.mxu0
  %108 = vdwg.mxu0
  %109 = vst [vmem:[%s3] sm:$0xff] %v101
  %110 = vst [vmem:[%s3 + $0x8] sm:$0xff] %v106
  // Predicated region
  $region14: #{token_classification_head.1} parent=0 // pred_check
    _
  $region15: #{token_classification_head.1} parent=0 // pred_check_branch
    %112 = sbr.rel (0) target = $region17
  $region16: #{token_classification_head.1} parent=0 // pred_region
    _
  $region17: #{token_classification_head.1} parent=0 // pred_fallthru
    _
  // Predicated region
  $region18: #{token_classification_head.1} parent=0 // pred_check
    _
  $region19: #{token_classification_head.1} parent=0 // pred_check_branch
    %114 = sbr.rel (0) target = $region21
  $region20: #{token_classification_head.1} parent=0 // pred_region
    _
  $region21: #{token_classification_head.1} parent=0 // pred_fallthru
    _

</llo_original>
